<compile_context>
chip_gen: v7x
topology: tpu7x:2x2x1
jax: 0.10.0
libtpu: 0.0.40
codegen_flags: <defaults>
</compile_context>

<pallas_src>
import math

import jax
import jax.numpy as jnp
from jax.experimental import pallas as pl
from jax.experimental.pallas import tpu as pltpu


def _round_up(x, m):
    return ((x + m - 1) // m) * m


def _fused_head_kernel(pooled_ref, a_ref, b_ref, w_ref, bias_ref, out_ref):
    """One (batch_block, task) grid point.

    pooled_ref : (bm, H)        f32   (resident across the task axis)
    a_ref      : (1, r, H)      bf16  (scaling already folded in)
    b_ref      : (1, H, r)      bf16
    w_ref      : (1, H, L_pad)  bf16  (classifier weight, pre-transposed)
    bias_ref   : (1, 1, L_pad)  f32
    out_ref    : (1, bm, L_pad) f32
    """
    pooled = pooled_ref[...]                          # (bm, H) f32
    pooled_bf = pooled.astype(jnp.bfloat16)

    # Factored LoRA: t = x @ A_scaled.T  -> (bm, r); contract last dims (no .T).
    t = jax.lax.dot_general(
        pooled_bf, a_ref[0],
        (((1,), (1,)), ((), ())),
        preferred_element_type=jnp.float32)

    # lora = t @ B.T -> (bm, H); contract last dims.
    lora = jax.lax.dot_general(
        t.astype(jnp.bfloat16), b_ref[0],
        (((1,), (1,)), ((), ())),
        preferred_element_type=jnp.float32)

    # Residual add in f32 (dropout == identity in eval mode).
    h = pooled + lora                                 # (bm, H) f32

    # Classifier: W pre-transposed to (H, L_pad) -> plain (M,K)@(K,N) matmul.
    logits = jnp.dot(h.astype(jnp.bfloat16), w_ref[0],
                     preferred_element_type=jnp.float32)
    out_ref[0] = logits + bias_ref[0]                 # bias add in f32


def multitask_lora_heads(pooled, tasks, *, alpha):
    """All task heads fused into one gridded pallas_call.

    pooled : (batch, hidden) f32
    tasks  : list of dicts with lora_A (r,H), lora_B (H,r), clf_W (L,H), clf_b (L,)
    Returns a list of per-task logits (batch, num_labels_t) f32.
    """
    batch, hidden = pooled.shape
    num_tasks = len(tasks)
    r = tasks[0]["lora_A"].shape[0]
    scaling = float(alpha) / float(r)

    num_labels_list = [t["clf_W"].shape[0] for t in tasks]
    l_pad = _round_up(max(num_labels_list), 128)      # lane-dense output slab

    # Batch tiling: sublane-friendly block, grid over batch blocks if large.
    bm = 128 if batch >= 128 else _round_up(batch, 8)
    batch_pad = _round_up(batch, bm)
    num_bblocks = batch_pad // bm
    pooled_p = jnp.pad(pooled, ((0, batch_pad - batch), (0, 0)))

    # Stack per-task weights; fold scaling into A; pre-transpose & pad W.
    a_stk = (jnp.stack([t["lora_A"] for t in tasks]) * scaling).astype(jnp.bfloat16)
    b_stk = jnp.stack([t["lora_B"] for t in tasks]).astype(jnp.bfloat16)
    w_stk = jnp.stack([
        jnp.pad(t["clf_W"].T, ((0, 0), (0, l_pad - t["clf_W"].shape[0])))
        for t in tasks]).astype(jnp.bfloat16)                       # (T, H, L_pad)
    bias_stk = jnp.stack([
        jnp.pad(t["clf_b"], (0, l_pad - t["clf_b"].shape[0]))[None, :]
        for t in tasks]).astype(jnp.float32)                        # (T, 1, L_pad)

    out = pl.pallas_call(
        _fused_head_kernel,
        out_shape=jax.ShapeDtypeStruct((num_tasks, batch_pad, l_pad), jnp.float32),
        grid=(num_bblocks, num_tasks),
        in_specs=[
            pl.BlockSpec((bm, hidden), lambda bi, ti: (bi, 0)),      # pooled (task-resident)
            pl.BlockSpec((1, r, hidden), lambda bi, ti: (ti, 0, 0)),  # A
            pl.BlockSpec((1, hidden, r), lambda bi, ti: (ti, 0, 0)),  # B
            pl.BlockSpec((1, hidden, l_pad), lambda bi, ti: (ti, 0, 0)),  # W^T (padded)
            pl.BlockSpec((1, 1, l_pad), lambda bi, ti: (ti, 0, 0)),   # bias
        ],
        out_specs=pl.BlockSpec((1, bm, l_pad), lambda bi, ti: (ti, bi, 0)),
        compiler_params=pltpu.CompilerParams(
            dimension_semantics=("parallel", "parallel")),
    )(pooled_p, a_stk, b_stk, w_stk, bias_stk)

    return [out[i, :batch, :nl] for i, nl in enumerate(num_labels_list)]


def encoder_stub(input_ids, attention_mask, embedding, w_enc, b_enc):
    """Deterministic stand-in for the pretrained encoder (plain JAX glue).

    Returns the hidden state of token 0 (CLS position), matching
    `outputs.last_hidden_state[:, 0]` semantics.
    """
    emb = embedding[input_ids]                                     # (B, S, H)
    hidden = jnp.tanh(emb @ w_enc + b_enc)                         # (B, S, H)
    hidden = hidden * attention_mask[..., None].astype(hidden.dtype)
    return hidden[:, 0]                                            # (B, H)


def multitask_lora_forward(input_ids, attention_mask, params, *, alpha, r):
    del r  # r is read from the stacked LoRA weights
    pooled = encoder_stub(input_ids, attention_mask,
                          params["embedding"], params["w_enc"], params["b_enc"])
    return multitask_lora_heads(pooled, params["tasks"], alpha=alpha)


def init_params(key, *, vocab, hidden, r, num_labels_list):
    """Deterministic parameter init mirroring the module's shapes."""
    keys = jax.random.split(key, 3 + 4 * len(num_labels_list))
    params = {
        "embedding": jax.random.normal(keys[0], (vocab, hidden), jnp.float32) * 0.02,
        "w_enc": jax.random.normal(keys[1], (hidden, hidden), jnp.float32) * 0.02,
        "b_enc": jax.random.normal(keys[2], (hidden,), jnp.float32) * 0.02,
        "tasks": [],
    }
    kaiming_bound = math.sqrt(6.0 / hidden) / math.sqrt(1.0 + 5.0)  # kaiming_uniform(a=sqrt(5))
    for t, num_labels in enumerate(num_labels_list):
        k = keys[3 + 4 * t: 3 + 4 * (t + 1)]
        params["tasks"].append({
            # lora_A ~ kaiming_uniform; lora_B is zeros in the reference init —
            # use small random values here so the LoRA path is actually exercised.
            "lora_A": jax.random.uniform(k[0], (r, hidden), jnp.float32,
                                         -kaiming_bound, kaiming_bound),
            "lora_B": jax.random.normal(k[1], (hidden, r), jnp.float32) * 0.02,
            "clf_W": jax.random.normal(k[2], (num_labels, hidden), jnp.float32) * 0.02,
            "clf_b": jax.random.normal(k[3], (num_labels,), jnp.float32) * 0.02,
        })
    return params


def reference_forward(input_ids, attention_mask, params, *, alpha, r):
    """Pure-JAX reference using the same bf16-operand / f32-accumulate math."""
    pooled = encoder_stub(input_ids, attention_mask,
                          params["embedding"], params["w_enc"], params["b_enc"])
    scaling = float(alpha) / float(r)
    outs = []
    pooled_bf = pooled.astype(jnp.bfloat16)
    for task in params["tasks"]:
        a = (task["lora_A"] * scaling).astype(jnp.bfloat16)
        b = task["lora_B"].astype(jnp.bfloat16)
        t = jax.lax.dot_general(pooled_bf, a, (((1,), (1,)), ((), ())),
                                preferred_element_type=jnp.float32)
        lora = jax.lax.dot_general(t.astype(jnp.bfloat16), b, (((1,), (1,)), ((), ())),
                                   preferred_element_type=jnp.float32)
        h = pooled + lora
        logits = jnp.dot(h.astype(jnp.bfloat16),
                         task["clf_W"].T.astype(jnp.bfloat16),
                         preferred_element_type=jnp.float32) + task["clf_b"]
        outs.append(logits)
    return outs


if __name__ == "__main__":
    # Small shapes consistent with the module's forward.
    batch, seq, hidden, vocab = 2, 8, 32, 50
    lora_r, lora_alpha = 8, 32
    num_labels_list = [3, 5]

    key = jax.random.PRNGKey(0)
    k_params, k_ids = jax.random.split(key)

    params = init_params(k_params, vocab=vocab, hidden=hidden,
                         r=lora_r, num_labels_list=num_labels_list)

    input_ids = jax.random.randint(k_ids, (batch, seq), 0, vocab, dtype=jnp.int32)
    attention_mask = jnp.ones((batch, seq), dtype=jnp.int32)

    logits = multitask_lora_forward(input_ids, attention_mask, params,
                                    alpha=lora_alpha, r=lora_r)
    logits = [jax.block_until_ready(l) for l in logits]

    ref = reference_forward(input_ids, attention_mask, params,
                            alpha=lora_alpha, r=lora_r)
    for got, want, nl in zip(logits, ref, num_labels_list):
        assert got.shape == (batch, nl), got.shape
        assert jnp.allclose(got, want, atol=1e-3, rtol=1e-3), (got, want)

    print("KERNEL_OK")
</pallas_src>

<mosaic_0001>
module attributes {stable_mosaic.version = 11 : i64} {
  func.func @_fused_head_kernel(%arg0: i32, %arg1: i32, %arg2: memref<8x32xf32, #tpu.memory_space<vmem>>, %arg3: memref<1x8x32xbf16, #tpu.memory_space<vmem>>, %arg4: memref<1x32x8xbf16, #tpu.memory_space<vmem>>, %arg5: memref<1x32x128xbf16, #tpu.memory_space<vmem>>, %arg6: memref<1x1x128xf32, #tpu.memory_space<vmem>>, %arg7: memref<1x8x128xf32, #tpu.memory_space<vmem>>) attributes {dimension_semantics = [#tpu.dimension_semantics<parallel>, #tpu.dimension_semantics<parallel>], iteration_bounds = array<i64: 1, 2>, scalar_prefetch = 0 : i64, scratch_operands = 0 : i64, tpu.core_type = #tpu.core_type<tc>, window_params = [{transform_indices = @transform_0, window_bounds = array<i64: 8, 32>}, {transform_indices = @transform_1, window_bounds = array<i64: 1, 8, 32>}, {transform_indices = @transform_2, window_bounds = array<i64: 1, 32, 8>}, {transform_indices = @transform_3, window_bounds = array<i64: 1, 32, 128>}, {transform_indices = @transform_4, window_bounds = array<i64: 1, 1, 128>}, {transform_indices = @transform_5, window_bounds = array<i64: 1, 8, 128>}]} {
    %c0 = arith.constant 0 : index
    %c0_0 = arith.constant 0 : index
    %0 = vector.load %arg2[%c0, %c0_0] : memref<8x32xf32, #tpu.memory_space<vmem>>, vector<8x32xf32>
    %1 = arith.truncf %0 : vector<8x32xf32> to vector<8x32xbf16>
    %c0_1 = arith.constant 0 : index
    %c0_2 = arith.constant 0 : index
    %c0_3 = arith.constant 0 : index
    %2 = vector.load %arg3[%c0_1, %c0_2, %c0_3] : memref<1x8x32xbf16, #tpu.memory_space<vmem>>, vector<1x8x32xbf16>
    %3 = vector.shape_cast %2 : vector<1x8x32xbf16> to vector<8x32xbf16>
    %cst = arith.constant dense<0.000000e+00> : vector<8x8xf32>
    %4 = tpu.matmul %1, %3, %cst {dimension_numbers = #tpu.dot_dimension_numbers<[1], [1], [0], [0], [0, 0, 1, 0], [], []>} : vector<8x32xbf16>, vector<8x32xbf16>, vector<8x8xf32> -> vector<8x8xf32>
    %5 = arith.truncf %4 : vector<8x8xf32> to vector<8x8xbf16>
    %c0_4 = arith.constant 0 : index
    %c0_5 = arith.constant 0 : index
    %c0_6 = arith.constant 0 : index
    %6 = vector.load %arg4[%c0_4, %c0_5, %c0_6] : memref<1x32x8xbf16, #tpu.memory_space<vmem>>, vector<1x32x8xbf16>
    %7 = vector.shape_cast %6 : vector<1x32x8xbf16> to vector<32x8xbf16>
    %cst_7 = arith.constant dense<0.000000e+00> : vector<8x32xf32>
    %8 = tpu.matmul %5, %7, %cst_7 {dimension_numbers = #tpu.dot_dimension_numbers<[1], [1], [0], [0], [0, 0, 1, 0], [], []>} : vector<8x8xbf16>, vector<32x8xbf16>, vector<8x32xf32> -> vector<8x32xf32>
    %9 = arith.addf %0, %8 : vector<8x32xf32>
    %10 = arith.truncf %9 : vector<8x32xf32> to vector<8x32xbf16>
    %c0_8 = arith.constant 0 : index
    %c0_9 = arith.constant 0 : index
    %c0_10 = arith.constant 0 : index
    %11 = vector.load %arg5[%c0_8, %c0_9, %c0_10] : memref<1x32x128xbf16, #tpu.memory_space<vmem>>, vector<1x32x128xbf16>
    %12 = vector.shape_cast %11 : vector<1x32x128xbf16> to vector<32x128xbf16>
    %cst_11 = arith.constant dense<0.000000e+00> : vector<8x128xf32>
    %13 = tpu.matmul %10, %12, %cst_11 {dimension_numbers = #tpu.dot_dimension_numbers<[1], [0], [0], [1], [0, 0, 1, 1], [], []>} : vector<8x32xbf16>, vector<32x128xbf16>, vector<8x128xf32> -> vector<8x128xf32>
    %c0_12 = arith.constant 0 : index
    %c0_13 = arith.constant 0 : index
    %c0_14 = arith.constant 0 : index
    %14 = vector.load %arg6[%c0_12, %c0_13, %c0_14] : memref<1x1x128xf32, #tpu.memory_space<vmem>>, vector<1x1x128xf32>
    %15 = vector.shape_cast %14 : vector<1x1x128xf32> to vector<1x128xf32>
    %16 = vector.broadcast %15 : vector<1x128xf32> to vector<8x128xf32>
    %17 = arith.addf %13, %16 : vector<8x128xf32>
    %c0_15 = arith.constant 0 : index
    %c0_16 = arith.constant 0 : index
    %c0_17 = arith.constant 0 : index
    %18 = vector.load %arg7[%c0_15, %c0_16, %c0_17] : memref<1x8x128xf32, #tpu.memory_space<vmem>>, vector<1x8x128xf32>
    %19 = vector.shape_cast %18 : vector<1x8x128xf32> to vector<8x128xf32>
    %20 = vector.shape_cast %17 : vector<8x128xf32> to vector<1x8x128xf32>
    tpu.vector_store %arg7[%c0_15, %c0_16, %c0_17], %20 {strides = array<i32>} : memref<1x8x128xf32, #tpu.memory_space<vmem>>, vector<1x8x128xf32>,
    return
  }
  func.func @transform_0(%arg0: i32, %arg1: i32) -> (i32, i32) {
    %c0_i32 = arith.constant 0 : i32
    %c0_i32_0 = arith.constant 0 : i32
    return %arg0, %c0_i32 : i32, i32
  }
  func.func @transform_1(%arg0: i32, %arg1: i32) -> (i32, i32, i32) {
    %c0_i32 = arith.constant 0 : i32
    %c0_i32_0 = arith.constant 0 : i32
    %c0_i32_1 = arith.constant 0 : i32
    return %arg1, %c0_i32, %c0_i32_0 : i32, i32, i32
  }
  func.func @transform_2(%arg0: i32, %arg1: i32) -> (i32, i32, i32) {
    %c0_i32 = arith.constant 0 : i32
    %c0_i32_0 = arith.constant 0 : i32
    %c0_i32_1 = arith.constant 0 : i32
    return %arg1, %c0_i32, %c0_i32_0 : i32, i32, i32
  }
  func.func @transform_3(%arg0: i32, %arg1: i32) -> (i32, i32, i32) {
    %c0_i32 = arith.constant 0 : i32
    %c0_i32_0 = arith.constant 0 : i32
    %c0_i32_1 = arith.constant 0 : i32
    return %arg1, %c0_i32, %c0_i32_0 : i32, i32, i32
  }
  func.func @transform_4(%arg0: i32, %arg1: i32) -> (i32, i32, i32) {
    %c0_i32 = arith.constant 0 : i32
    %c0_i32_0 = arith.constant 0 : i32
    %c0_i32_1 = arith.constant 0 : i32
    return %arg1, %c0_i32, %c0_i32_0 : i32, i32, i32
  }
  func.func @transform_5(%arg0: i32, %arg1: i32) -> (i32, i32, i32) {
    %c0_i32 = arith.constant 0 : i32
    %c0_i32_0 = arith.constant 0 : i32
    return %arg1, %arg0, %c0_i32 : i32, i32, i32
  }
}

</mosaic_0001>

<llo_original>
// kernel: tpu_custom_call.1
$region0: #{tpu_custom_call.1}
  #allocation0 [shape = 'u32[]', space=smem, size = 0x4, offset = 0x4, fixed_abs, tag = 'smem constant byte address 0x4 - core index']
  #allocation1 [shape = 'u32[144,128]{1,0:T(1,128)}', space=vmem, size = 0x12000, scoped, tag = 'internal scratch']
  %s0 = inlined_call_operand.vmem [shape: f32[8,32], index: 0, kind: input, shape index: {}]
  %s1 = inlined_call_operand.vmem [shape: bf16[2,8,32], index: 1, kind: input, shape index: {}]
  %s2 = inlined_call_operand.vmem [shape: bf16[2,32,8], index: 2, kind: input, shape index: {}]
  %s3 = inlined_call_operand.vmem [shape: bf16[2,32,128], index: 3, kind: input, shape index: {}]
  %s4 = inlined_call_operand.vmem [shape: f32[2,1,128], index: 4, kind: input, shape index: {}]
  %s5 = inlined_call_operand.hbm [shape: f32[2,8,128], index: 5, kind: output, shape index: {}]
  %s6 = sld [smem:[#allocation0]]
  $region53: #{tpu_custom_call.1} parent=0
    _
  %s8 = ssub.s32 1, %s6
  %s9 = scalar_select 0, %s8, %s6
  $region1: #{tpu_custom_call.1} parent=0
    #allocation2 [shape = 'u8[8192]{0}', space=vmem, size = 0x2000, scoped, tag = 'output window, operand 0']
    #allocation3 [shape = 's32[2]{0}', space=sflag, size = 0x8, scoped, tag = 'scoped memory for tpu_custom_call.1']
    %10 = vsyncpa [#allocation3], 0
    %s11 = scalar_lea.sflag [#allocation3], 1
    %12 = vsyncpa %s11, 0
    loop: start=0, step=1, limit=4
    $region2: #{tpu_custom_call.1} parent=1 // loop_pre_header
      _
    $region3: #{tpu_custom_call.1} parent=1 // loop_header
      %s14 = sphi 0, %s18
      %p15 = scmp.ge.s32.totalorder %s14, 4
      %s21 = sphi 0, %s33
      %s22 = sphi 0, %s29
      %s23 = sphi 0, %s21
      %s24 = sphi 0, %s22
      %s25 = sphi 0, %s23
      %s26 = sphi 0, %s24
      %s36 = sphi 0, %s38
      %s39 = sphi 0, %s36
      %s40 = sphi 0, %s39
      %s56 = sphi 0, %s40
      %s62 = sphi 0, %s64
      %s65 = sphi 0, %s62
      %s66 = sphi 0, %s65
      %s82 = sphi 0, %s66
      %s88 = sphi 0, %s90
      %s91 = sphi 0, %s88
      %s92 = sphi 0, %s91
      %s108 = sphi 0, %s92
      %s114 = sphi 0, %s116
      %s117 = sphi 0, %s114
      %s118 = sphi 0, %s117
      %s134 = sphi 0, %s118
      %s140 = sphi 0, %s142
      %s143 = sphi 0, %s140
      %s144 = sphi 0, %s143
      %s160 = sphi 0, %s144
      %s168 = sphi 0, %s170
      %s171 = sphi 0, %s168
      %s172 = sphi 0, %s171
      %s188 = sphi 0, %s172
    $region4: #{tpu_custom_call.1} parent=1 // loop_header_branch
      %17 = sbr.rel (%p15) target = $region8
    $region5: #{tpu_custom_call.1} parent=1 // loop_body
      %s19 = ssub.s32 %s14, 1
      %s20 = ssub.s32 %s14, 2
      %s27 = sadd.s32 1, %s22
      %p28 = scmp.ge.s32.totalorder %s27, 2
      %s29 = scalar_select %p28, 0, %s27
      %s30 = sadd.s32 1, %s21
      %s31 = scalar_select %p28, %s30, %s21
      %p32 = scmp.ge.s32.totalorder %s31, 1
      %s33 = scalar_select %p32, 0, %s31
      %s34 = ssub.s32 %s21, %s33
      %p35 = scmp.eq.s32.totalorder %s34, 0
      %s37 = sadd.s32 %s36, 1
      %s38 = scalar_select %p35, %s36, %s37
      %p41 = pneg %p35
      %p42 = scmp.eq.s32.totalorder %s14, 1
      %p43 = por %p41, %p42
      %p44 = scmp.ne.s32.totalorder %s36, %s39
      %p45 = scmp.eq.s32.totalorder %s14, 0
      %p46 = por %p44, %p45
      %p47 = scmp.ne.s32.totalorder %s36, %s39
      %p48 = scmp.eq.s32.totalorder %s19, 1
      %p49 = por %p47, %p48
      %p50 = scmp.ne.s32.totalorder %s39, %s40
      %p51 = scmp.eq.s32.totalorder %s19, 0
      %p52 = por %p50, %p51
      %p53 = scmp.ne.s32.totalorder %s39, %s40
      %p54 = scmp.eq.s32.totalorder %s20, 1
      %p55 = por %p53, %p54
      %p57 = scmp.ne.s32.totalorder %s40, %s56
      %p58 = scmp.eq.s32.totalorder %s20, 0
      %p59 = por %p57, %p58
      %s60 = ssub.s32 %s22, %s29
      %p61 = scmp.eq.s32.totalorder %s60, 0
      %s63 = sadd.s32 %s62, 1
      %s64 = scalar_select %p61, %s62, %s63
      %p67 = pneg %p61
      %p68 = scmp.eq.s32.totalorder %s14, 1
      %p69 = por %p67, %p68
      %p70 = scmp.ne.s32.totalorder %s62, %s65
      %p71 = scmp.eq.s32.totalorder %s14, 0
      %p72 = por %p70, %p71
      %p73 = scmp.ne.s32.totalorder %s62, %s65
      %p74 = scmp.eq.s32.totalorder %s19, 1
      %p75 = por %p73, %p74
      %p76 = scmp.ne.s32.totalorder %s65, %s66
      %p77 = scmp.eq.s32.totalorder %s19, 0
      %p78 = por %p76, %p77
      %p79 = scmp.ne.s32.totalorder %s65, %s66
      %p80 = scmp.eq.s32.totalorder %s20, 1
      %p81 = por %p79, %p80
      %p83 = scmp.ne.s32.totalorder %s66, %s82
      %p84 = scmp.eq.s32.totalorder %s20, 0
      %p85 = por %p83, %p84
      %s86 = ssub.s32 %s22, %s29
      %p87 = scmp.eq.s32.totalorder %s86, 0
      %s89 = sadd.s32 %s88, 1
      %s90 = scalar_select %p87, %s88, %s89
      %p93 = pneg %p87
      %p94 = scmp.eq.s32.totalorder %s14, 1
      %p95 = por %p93, %p94
      %p96 = scmp.ne.s32.totalorder %s88, %s91
      %p97 = scmp.eq.s32.totalorder %s14, 0
      %p98 = por %p96, %p97
      %p99 = scmp.ne.s32.totalorder %s88, %s91
      %p100 = scmp.eq.s32.totalorder %s19, 1
      %p101 = por %p99, %p100
      %p102 = scmp.ne.s32.totalorder %s91, %s92
      %p103 = scmp.eq.s32.totalorder %s19, 0
      %p104 = por %p102, %p103
      %p105 = scmp.ne.s32.totalorder %s91, %s92
      %p106 = scmp.eq.s32.totalorder %s20, 1
      %p107 = por %p105, %p106
      %p109 = scmp.ne.s32.totalorder %s92, %s108
      %p110 = scmp.eq.s32.totalorder %s20, 0
      %p111 = por %p109, %p110
      %s112 = ssub.s32 %s22, %s29
      %p113 = scmp.eq.s32.totalorder %s112, 0
      %s115 = sadd.s32 %s114, 1
      %s116 = scalar_select %p113, %s114, %s115
      %p119 = pneg %p113
      %p120 = scmp.eq.s32.totalorder %s14, 1
      %p121 = por %p119, %p120
      %p122 = scmp.ne.s32.totalorder %s114, %s117
      %p123 = scmp.eq.s32.totalorder %s14, 0
      %p124 = por %p122, %p123
      %p125 = scmp.ne.s32.totalorder %s114, %s117
      %p126 = scmp.eq.s32.totalorder %s19, 1
      %p127 = por %p125, %p126
      %p128 = scmp.ne.s32.totalorder %s117, %s118
      %p129 = scmp.eq.s32.totalorder %s19, 0
      %p130 = por %p128, %p129
      %p131 = scmp.ne.s32.totalorder %s117, %s118
      %p132 = scmp.eq.s32.totalorder %s20, 1
      %p133 = por %p131, %p132
      %p135 = scmp.ne.s32.totalorder %s118, %s134
      %p136 = scmp.eq.s32.totalorder %s20, 0
      %p137 = por %p135, %p136
      %s138 = ssub.s32 %s22, %s29
      %p139 = scmp.eq.s32.totalorder %s138, 0
      %s141 = sadd.s32 %s140, 1
      %s142 = scalar_select %p139, %s140, %s141
      %p145 = pneg %p139
      %p146 = scmp.eq.s32.totalorder %s14, 1
      %p147 = por %p145, %p146
      %p148 = scmp.ne.s32.totalorder %s140, %s143
      %p149 = scmp.eq.s32.totalorder %s14, 0
      %p150 = por %p148, %p149
      %p151 = scmp.ne.s32.totalorder %s140, %s143
      %p152 = scmp.eq.s32.totalorder %s19, 1
      %p153 = por %p151, %p152
      %p154 = scmp.ne.s32.totalorder %s143, %s144
      %p155 = scmp.eq.s32.totalorder %s19, 0
      %p156 = por %p154, %p155
      %p157 = scmp.ne.s32.totalorder %s143, %s144
      %p158 = scmp.eq.s32.totalorder %s20, 1
      %p159 = por %p157, %p158
      %p161 = scmp.ne.s32.totalorder %s144, %s160
      %p162 = scmp.eq.s32.totalorder %s20, 0
      %p163 = por %p161, %p162
      %s164 = ssub.s32 %s22, %s29
      %s165 = ssub.s32 %s21, %s33
      %s166 = sor.u32 %s164, %s165
      %p167 = scmp.eq.s32.totalorder %s166, 0
      %s169 = sadd.s32 %s168, 1
      %s170 = scalar_select %p167, %s168, %s169
      %p173 = pneg %p167
      %p174 = scmp.eq.s32.totalorder %s14, 1
      %p175 = por %p173, %p174
      %p176 = scmp.ne.s32.totalorder %s168, %s171
      %p177 = scmp.eq.s32.totalorder %s14, 0
      %p178 = por %p176, %p177
      %p179 = scmp.ne.s32.totalorder %s168, %s171
      %p180 = scmp.eq.s32.totalorder %s19, 1
      %p181 = por %p179, %p180
      %p182 = scmp.ne.s32.totalorder %s171, %s172
      %p183 = scmp.eq.s32.totalorder %s19, 0
      %p184 = por %p182, %p183
      %p185 = scmp.ne.s32.totalorder %s171, %s172
      %p186 = scmp.eq.s32.totalorder %s20, 1
      %p187 = por %p185, %p186
      %p189 = scmp.ne.s32.totalorder %s172, %s188
      %p190 = scmp.eq.s32.totalorder %s20, 0
      %p191 = por %p189, %p190
      %p192 = scmp.le.s32.totalorder 1, %s14
      %p193 = scmp.lt.s32.totalorder %s14, 3
      %p194 = pnand %p192, %p193
      %p195 = pneg %p194
      // Predicated region
      $region9: #{tpu_custom_call.1} parent=5 // pred_check
        _
      $region10: #{tpu_custom_call.1} parent=5 // pred_check_branch
        %197 = sbr.rel (%p194) target = $region12
      $region11: #{tpu_custom_call.1} parent=5 // pred_region
        %s198 = ssub.s32 %s14, 1
        // Predicated region
        $region13: #{tpu_custom_call.1} parent=11 // pred_check
          %p199 = pneg %p52
        $region14: #{tpu_custom_call.1} parent=11 // pred_check_branch
          %201 = sbr.rel (%p199) target = $region16
        $region15: #{tpu_custom_call.1} parent=11 // pred_region
          %p202 = scmp.lt.s32.totalorder %s23, 0
          %s203 = scalar_select %p202, %s23, 0
          %s204 = smul.addr %s203, 8
          %s205 = scalar_lea.vmem %s0, %s204
        $region16: #{tpu_custom_call.1} parent=11 // pred_fallthru
          _
      $region12: #{tpu_custom_call.1} parent=5 // pred_fallthru
        _
      %p206 = scmp.lt.s32.totalorder %s14, 2
      // Predicated region
      $region17: #{tpu_custom_call.1} parent=5 // pred_check
        %p207 = pneg %p206
      $region18: #{tpu_custom_call.1} parent=5 // pred_check_branch
        %209 = sbr.rel (%p207) target = $region20
      $region19: #{tpu_custom_call.1} parent=5 // pred_region
        // Predicated region
        $region21: #{tpu_custom_call.1} parent=19 // pred_check
          %p210 = pneg %p72
        $region22: #{tpu_custom_call.1} parent=19 // pred_check_branch
          %212 = sbr.rel (%p210) target = $region24
        $region23: #{tpu_custom_call.1} parent=19 // pred_region
          %p213 = scmp.lt.s32.totalorder %s22, 1
          %s214 = scalar_select %p213, %s22, 1
          %s215 = smul.addr %s214, 4
          %s216 = scalar_lea.vmem %s1, %s215
        $region24: #{tpu_custom_call.1} parent=19 // pred_fallthru
          _
        // Predicated region
        $region25: #{tpu_custom_call.1} parent=19 // pred_check
          %p217 = pneg %p98
        $region26: #{tpu_custom_call.1} parent=19 // pred_check_branch
          %219 = sbr.rel (%p217) target = $region28
        $region27: #{tpu_custom_call.1} parent=19 // pred_region
          %p220 = scmp.lt.s32.totalorder %s22, 1
          %s221 = scalar_select %p220, %s22, 1
          %s222 = smul.addr %s221, 4
          %s223 = smul.addr %s222, 4
          %s224 = scalar_lea.vmem %s2, %s223
        $region28: #{tpu_custom_call.1} parent=19 // pred_fallthru
          _
        // Predicated region
        $region29: #{tpu_custom_call.1} parent=19 // pred_check
          %p225 = pneg %p124
        $region30: #{tpu_custom_call.1} parent=19 // pred_check_branch
          %227 = sbr.rel (%p225) target = $region32
        $region31: #{tpu_custom_call.1} parent=19 // pred_region
          %p228 = scmp.lt.s32.totalorder %s22, 1
          %s229 = scalar_select %p228, %s22, 1
          %s230 = smul.addr %s229, 4
          %s231 = smul.addr %s230, 4
          %s232 = scalar_lea.vmem %s3, %s231
        $region32: #{tpu_custom_call.1} parent=19 // pred_fallthru
          _
        // Predicated region
        $region33: #{tpu_custom_call.1} parent=19 // pred_check
          %p233 = pneg %p150
        $region34: #{tpu_custom_call.1} parent=19 // pred_check_branch
          %235 = sbr.rel (%p233) target = $region36
        $region35: #{tpu_custom_call.1} parent=19 // pred_region
          %p236 = scmp.lt.s32.totalorder %s22, 1
          %s237 = scalar_select %p236, %s22, 1
          %s238 = scalar_lea.vmem %s4, %s237
        $region36: #{tpu_custom_call.1} parent=19 // pred_fallthru
          _
      $region20: #{tpu_custom_call.1} parent=5 // pred_fallthru
        _
      %p239 = scmp.le.s32.totalorder 1, %s14
      %p240 = scmp.lt.s32.totalorder %s14, 3
      %p241 = pnand %p239, %p240
      %p242 = pneg %p241
      // Predicated region
      $region37: #{tpu_custom_call.1} parent=5 // pred_check
        _
      $region38: #{tpu_custom_call.1} parent=5 // pred_check_branch
        %244 = sbr.rel (%p241) target = $region40
      $region39: #{tpu_custom_call.1} parent=5 // pred_region
        %s245 = ssub.s32 %s14, 1
        %p246 = scmp.lt.s32.totalorder %s23, 0
        %s247 = scalar_select %p246, %s23, 0
        %s248 = smul.addr %s247, 8
        %s249 = scalar_lea.vmem %s0, %s248
        %p250 = pneg %p52
        %p251 = pneg %p49
        %p252 = scmp.lt.s32.totalorder %s24, 1
        %s253 = scalar_select %p252, %s24, 1
        %s254 = smul.addr %s253, 4
        %s255 = scalar_lea.vmem %s1, %s254
        %p256 = pneg %p78
        %p257 = pneg %p75
        %p258 = scmp.lt.s32.totalorder %s24, 1
        %s259 = scalar_select %p258, %s24, 1
        %s260 = smul.addr %s259, 4
        %s261 = smul.addr %s260, 4
        %s262 = scalar_lea.vmem %s2, %s261
        %p263 = pneg %p104
        %p264 = pneg %p101
        %p265 = scmp.lt.s32.totalorder %s24, 1
        %s266 = scalar_select %p265, %s24, 1
        %s267 = smul.addr %s266, 4
        %s268 = smul.addr %s267, 4
        %s269 = scalar_lea.vmem %s3, %s268
        %p270 = pneg %p130
        %p271 = pneg %p127
        %p272 = scmp.lt.s32.totalorder %s24, 1
        %s273 = scalar_select %p272, %s24, 1
        %s274 = scalar_lea.vmem %s4, %s273
        %p275 = pneg %p156
        %p276 = pneg %p153
        %p277 = pneg %p184
        %p278 = pneg %p181
        %s279 = sand.u32 %s171, 1
        %s280 = scalar_lea.sflag [#allocation3], %s279
        %s281 = sand.u32 %s171, 1
        %s282 = smul.addr %s281, 8
        %s283 = scalar_lea.vmem [#allocation2], %s282
        %p284 = scmp.lt.s32.totalorder %s23, 0
        %s285 = scalar_select %p284, %s23, 0
        %s286 = smul.addr %s285, 8
        %s287 = scalar_lea.vmem %s0, %s286
        %p288 = scmp.lt.s32.totalorder %s24, 1
        %s289 = scalar_select %p288, %s24, 1
        %s290 = smul.addr %s289, 4
        %s291 = scalar_lea.vmem %s1, %s290
        %p292 = scmp.lt.s32.totalorder %s24, 1
        %s293 = scalar_select %p292, %s24, 1
        %s294 = smul.addr %s293, 4
        %s295 = smul.addr %s294, 4
        %s296 = scalar_lea.vmem %s2, %s295
        %p297 = scmp.lt.s32.totalorder %s24, 1
        %s298 = scalar_select %p297, %s24, 1
        %s299 = smul.addr %s298, 4
        %s300 = smul.addr %s299, 4
        %s301 = scalar_lea.vmem %s3, %s300
        %p302 = scmp.lt.s32.totalorder %s24, 1
        %s303 = scalar_select %p302, %s24, 1
        %s304 = scalar_lea.vmem %s4, %s303
        %v306 = vld [vmem:[%s287] sm:$0xff]
        %v307 = vpack.c.bf16 %v306, %v306
        %v308 = vld [vmem:[%s291] sm:$0xf]
        %vm309 = vcmask 261120
        %v311 = vsel %vm309, %v307, 0
        %v314 = vsel %vm309, %v308, 0
        %316 = vmatprep.subr.bf16.mxu0 0
        %317 = vmatpush1.bf16.xpose.msra.mxu0 %v314
        %318 = vmatprep.subr.bf16.mxu0 0
        %319 = vmatpush1.bf16.xpose.msra.mxu0 0
        %320 = vmatprep.subr.bf16.mxu0 0
        %321 = vmatpush1.bf16.xpose.msra.mxu0 0
        %322 = vmatprep.subr.bf16.mxu0 0
        %323 = vmatpush1.bf16.xpose.msra.mxu0 0
        %324 = vmatprep.subr.bf16.mxu0 0
        %325 = vmatpush1.bf16.xpose.msra.mxu0 0
        %326 = vmatprep.subr.bf16.mxu0 0
        %327 = vmatpush1.bf16.xpose.msra.mxu0 0
        %328 = vmatprep.subr.bf16.mxu0 0
        %329 = vmatpush1.bf16.xpose.msra.mxu0 0
        %330 = vmatprep.subr.bf16.mxu0 0
        %331 = vmatpush1.bf16.xpose.msra.mxu0 0
        %332 = vmatprep.subr.bf16.mxu0 0
        %333 = vmatpush1.bf16.xpose.msra.mxu0 0
        %334 = vmatprep.subr.bf16.mxu0 0
        %335 = vmatpush1.bf16.xpose.msra.mxu0 0
        %336 = vmatprep.subr.bf16.mxu0 0
        %337 = vmatpush1.bf16.xpose.msra.mxu0 0
        %338 = vmatprep.subr.bf16.mxu0 0
        %339 = vmatpush1.bf16.xpose.msra.mxu0 0
        %340 = vmatprep.subr.bf16.mxu0 0
        %341 = vmatpush1.bf16.xpose.msra.mxu0 0
        %342 = vmatprep.subr.bf16.mxu0 0
        %343 = vmatpush1.bf16.xpose.msra.mxu0 0
        %344 = vmatprep.subr.bf16.mxu0 0
        %345 = vmatpush1.bf16.xpose.msra.mxu0 0
        %346 = vmatprep.subr.bf16.mxu0 0
        %347 = vmatpush1.bf16.xpose.msra.mxu0 0
        %348 = vmatprep.mubr.bf16.mxu0 0
        %349 = vmatmul.mubr.bf16.gmra.mrb[0].mxu0 %v311
        %v350 = vpop.f32.mrb[0].mxu0
        %v351 = vadd.f32 0.0, %v350
        %v352 = vpop.f32.mrb[0].mxu0
        %v353 = vpop.f32.mrb[0].mxu0
        %v354 = vpop.f32.mrb[0].mxu0
        %355 = vdwg.mxu0
        %v356 = vpack.c.bf16 %v351, %v351
        %v357 = vld [vmem:[%s296] sm:$0xf]
        %v358 = vld [vmem:[%s296 + $0x4] sm:$0xf]
        %v359 = vld [vmem:[%s296 + $0x8] sm:$0xf]
        %v360 = vld [vmem:[%s296 + $0xc] sm:$0xf]
        %v365 = vunpack.c.l.b16 %v357
        %v366 = vunpack.c.l.b16 %v358
        %v367 = vunpack.c.l.b16 %v359
        %v368 = vunpack.c.l.b16 %v360
        %v369 = vpack.c.b16 %v366, %v365
        %v370 = vpack.c.b16 %v368, %v367
        %vm371 = vcmask 64512
        %v373 = vsel %vm371, %v356, 0
        %v376 = vsel %vm371, %v369, 0
        %v379 = vsel %vm371, %v370, 0
        %381 = vmatprep.subr.bf16.mxu0 0
        %382 = vmatpush1.bf16.xpose.msra.mxu0 %v376
        %383 = vmatprep.subr.bf16.mxu0 0
        %384 = vmatpush1.bf16.xpose.msra.mxu0 %v379
        %385 = vmatprep.subr.bf16.mxu0 0
        %386 = vmatpush1.bf16.xpose.msra.mxu0 0
        %387 = vmatprep.subr.bf16.mxu0 0
        %388 = vmatpush1.bf16.xpose.msra.mxu0 0
        %389 = vmatprep.subr.bf16.mxu0 0
        %390 = vmatpush1.bf16.xpose.msra.mxu0 0
        %391 = vmatprep.subr.bf16.mxu0 0
        %392 = vmatpush1.bf16.xpose.msra.mxu0 0
        %393 = vmatprep.subr.bf16.mxu0 0
        %394 = vmatpush1.bf16.xpose.msra.mxu0 0
        %395 = vmatprep.subr.bf16.mxu0 0
        %396 = vmatpush1.bf16.xpose.msra.mxu0 0
        %397 = vmatprep.subr.bf16.mxu0 0
        %398 = vmatpush1.bf16.xpose.msra.mxu0 0
        %399 = vmatprep.subr.bf16.mxu0 0
        %400 = vmatpush1.bf16.xpose.msra.mxu0 0
        %401 = vmatprep.subr.bf16.mxu0 0
        %402 = vmatpush1.bf16.xpose.msra.mxu0 0
        %403 = vmatprep.subr.bf16.mxu0 0
        %404 = vmatpush1.bf16.xpose.msra.mxu0 0
        %405 = vmatprep.subr.bf16.mxu0 0
        %406 = vmatpush1.bf16.xpose.msra.mxu0 0
        %407 = vmatprep.subr.bf16.mxu0 0
        %408 = vmatpush1.bf16.xpose.msra.mxu0 0
        %409 = vmatprep.subr.bf16.mxu0 0
        %410 = vmatpush1.bf16.xpose.msra.mxu0 0
        %411 = vmatprep.subr.bf16.mxu0 0
        %412 = vmatpush1.bf16.xpose.msra.mxu0 0
        %413 = vmatprep.mubr.bf16.mxu0 0
        %414 = vmatmul.mubr.bf16.gmra.mrb[0].mxu0 %v373
        %v415 = vpop.f32.mrb[0].mxu0
        %v416 = vadd.f32 0.0, %v415
        %v417 = vpop.f32.mrb[0].mxu0
        %v418 = vpop.f32.mrb[0].mxu0
        %v419 = vpop.f32.mrb[0].mxu0
        %420 = vdwg.mxu0
        %v421 = vadd.f32 %v306, %v416
        %v422 = vpack.c.bf16 %v421, %v421
        %v423 = vld [vmem:[%s301] sm:$0xf]
        %v424 = vld [vmem:[%s301 + $0x4] sm:$0xf]
        %v425 = vld [vmem:[%s301 + $0x8] sm:$0xf]
        %v426 = vld [vmem:[%s301 + $0xc] sm:$0xf]
        %v427 = vld [vmem:[%s304] sm:$0x1]
        %v429 = vlaneseq
        %v430 = vshrl.u32 %v429, 7
        %v431 = vsub.s32 0, %v430
        %v432 = vrot.slane %v427, %v431
        %v438 = vunpack.c.l.b16 %v423
        %v439 = vunpack.c.l.b16 %v424
        %v440 = vunpack.c.l.b16 %v425
        %v441 = vunpack.c.l.b16 %v426
        %v442 = vpack.c.b16 %v439, %v438
        %v443 = vpack.c.b16 %v441, %v440
        %v447 = vsel %vm309, %v422, 0
        %449 = vmatprep.subr.bf16.mxu0 0
        %450 = vmatpush1.bf16.msra.mxu0 %v442
        %451 = vmatprep.subr.bf16.mxu0 0
        %452 = vmatpush1.bf16.msra.mxu0 %v443
        %453 = vmatprep.subr.bf16.mxu0 0
        %454 = vmatpush1.bf16.msra.mxu0 0
        %455 = vmatprep.subr.bf16.mxu0 0
        %456 = vmatpush1.bf16.msra.mxu0 0
        %457 = vmatprep.subr.bf16.mxu0 0
        %458 = vmatpush1.bf16.msra.mxu0 0
        %459 = vmatprep.subr.bf16.mxu0 0
        %460 = vmatpush1.bf16.msra.mxu0 0
        %461 = vmatprep.subr.bf16.mxu0 0
        %462 = vmatpush1.bf16.msra.mxu0 0
        %463 = vmatprep.subr.bf16.mxu0 0
        %464 = vmatpush1.bf16.msra.mxu0 0
        %465 = vmatprep.subr.bf16.mxu0 0
        %466 = vmatpush1.bf16.msra.mxu0 0
        %467 = vmatprep.subr.bf16.mxu0 0
        %468 = vmatpush1.bf16.msra.mxu0 0
        %469 = vmatprep.subr.bf16.mxu0 0
        %470 = vmatpush1.bf16.msra.mxu0 0
        %471 = vmatprep.subr.bf16.mxu0 0
        %472 = vmatpush1.bf16.msra.mxu0 0
        %473 = vmatprep.subr.bf16.mxu0 0
        %474 = vmatpush1.bf16.msra.mxu0 0
        %475 = vmatprep.subr.bf16.mxu0 0
        %476 = vmatpush1.bf16.msra.mxu0 0
        %477 = vmatprep.subr.bf16.mxu0 0
        %478 = vmatpush1.bf16.msra.mxu0 0
        %479 = vmatprep.subr.bf16.mxu0 0
        %480 = vmatpush1.bf16.msra.mxu0 0
        %481 = vmatprep.mubr.bf16.mxu0 0
        %482 = vmatmul.mubr.bf16.gmra.mrb[0].mxu0 %v447
        %v483 = vpop.f32.mrb[0].mxu0
        %v484 = vadd.f32 %v432, %v483
        %v485 = vpop.f32.mrb[0].mxu0
        %v486 = vpop.f32.mrb[0].mxu0
        %v487 = vpop.f32.mrb[0].mxu0
        %488 = vdwg.mxu0
        %489 = vst [vmem:[%s283] sm:$0xff] %v484
        %s490 = sand.u32 %s171, 1
        %s491 = scalar_lea.sflag [#allocation3], %s490
        %s492 = sand.u32 %s171, 1
        %s493 = smul.addr %s492, 8
        %s494 = scalar_lea.vmem [#allocation2], %s493
        // Predicated region
        $region41: #{tpu_custom_call.1} parent=39 // pred_check
          %p495 = pneg %p181
        $region42: #{tpu_custom_call.1} parent=39 // pred_check_branch
          %497 = sbr.rel (%p495) target = $region44
        $region43: #{tpu_custom_call.1} parent=39 // pred_region
          %s499 = ssub.s32 128, 128
          %500 = vsyncadd %s491, %s499
          %s501 = sadd.s32 %s23, %s24
          %s502 = smul.addr %s501, 128
          %s503 = scalar_lea.hbm %s5, %s502
          %s505 = sshll.u32 %s494, 4
          %s506 = int_to_ptr.vmem [resolvable:$true] %s505
          %508 = dma.vmem_to_hbm [thread:$0]  %s506, 128, %s503, %s491
        $region44: #{tpu_custom_call.1} parent=39 // pred_fallthru
          _
      $region40: #{tpu_custom_call.1} parent=5 // pred_fallthru
        _
      %p509 = scmp.le.s32.totalorder 2, %s14
      // Predicated region
      $region45: #{tpu_custom_call.1} parent=5 // pred_check
        %p510 = pneg %p509
      $region46: #{tpu_custom_call.1} parent=5 // pred_check_branch
        %512 = sbr.rel (%p510) target = $region48
      $region47: #{tpu_custom_call.1} parent=5 // pred_region
        %s513 = ssub.s32 %s14, 2
        // Predicated region
        $region49: #{tpu_custom_call.1} parent=47 // pred_check
          %p514 = pneg %p187
        $region50: #{tpu_custom_call.1} parent=47 // pred_check_branch
          %516 = sbr.rel (%p514) target = $region52
        $region51: #{tpu_custom_call.1} parent=47 // pred_region
          %s517 = sand.u32 %s172, 1
          %s518 = scalar_lea.sflag [#allocation3], %s517
          %s519 = sand.u32 %s172, 1
          %s520 = smul.addr %s519, 8
          %s521 = scalar_lea.vmem [#allocation2], %s520
          %522 = dma.done %s518, 128
        $region52: #{tpu_custom_call.1} parent=47 // pred_fallthru
          _
      $region48: #{tpu_custom_call.1} parent=5 // pred_fallthru
        _
    $region6: #{tpu_custom_call.1} parent=1 // loop_footer
      %s18 = sadd.s32 1, %s14
    $region7: #{tpu_custom_call.1} parent=1 // loop_footer_branch
      %13 = sbr.rel target = $region3
    $region8: #{tpu_custom_call.1} parent=1 // loop_exit
      _
    %523 = vsyncpa [#allocation3], 1
    %s524 = scalar_lea.sflag [#allocation3], 1
    %525 = vsyncpa %s524, 1

</llo_original>
